<compile_context>
chip_gen: v6e
topology: v6e:2x2x1
jax: 0.10.0
libtpu: 0.0.40
codegen_flags: <defaults>
</compile_context>

<pallas_src>
import functools

import jax
import jax.numpy as jnp
import numpy as np
from jax.experimental import pallas as pl
from jax.experimental.pallas import tpu as pltpu

EPS = 1e-5


def _round_up(v, m):
    return (v + m - 1) // m * m


def _cdiv(a, b):
    return -(-a // b)


# ---------------------------------------------------------------------------
# Kernel A (encoder): channels-last conv1..conv3 + running channel-max.
# grid = (B, n_outer, n_inner); gmax is a resident accumulator over n_inner.
# ---------------------------------------------------------------------------
def encoder_kernel(x_ref, w1_ref, b1_ref, w4_ref, b4_ref, w2_ref, b2_ref,
                   w3_ref, b3_ref, gmax_ref, *, n_valid, n_feat, n_inner):
    o = pl.program_id(1)
    i = pl.program_id(2)

    # Init the resident running-max accumulator once per (batch, outer) stripe.
    @pl.when(i == 0)
    def _():
        gmax_ref[...] = jnp.full(gmax_ref.shape, -jnp.inf, gmax_ref.dtype)

    x = x_ref[0]                                  # (tn, n_feat) f32
    tn = x.shape[0]

    # conv1 + bn1 + relu on the VPU (K = n_feat is tiny; keep the MXU free).
    w1 = w1_ref[...]                              # (n_feat, sf)
    h1 = b1_ref[...]                              # (1, sf), broadcasts below
    for c in range(n_feat):                       # static unroll
        h1 = h1 + x[:, c:c + 1] * w1[c:c + 1, :]
    h1 = jnp.maximum(h1, 0.0)                     # (tn, sf) f32

    def mm(a, w_ref):                             # bf16 MXU matmul, f32 accumulate
        return jnp.dot(a.astype(jnp.bfloat16), w_ref[...],
                       preferred_element_type=jnp.float32)

    # conv4 + bn12 + relu ; conv2 + bn2 + relu ; conv3 + bn3 + relu
    h2 = jnp.maximum(mm(h1, w4_ref) + b4_ref[...], 0.0)    # (tn, 2sf)
    h3 = jnp.maximum(mm(h2, w2_ref) + b2_ref[...], 0.0)    # (tn, 4sf)
    h4 = jnp.maximum(mm(h3, w3_ref) + b3_ref[...], 0.0)    # (tn, 8sf)

    # Mask padded point rows, fold the tile max into the accumulator.
    tile = o * n_inner + i
    row = tile * tn + jax.lax.broadcasted_iota(jnp.int32, (tn, 1), 0)
    h4 = jnp.where(row < n_valid, h4, -jnp.inf)
    gmax_ref[0, 0] = jnp.maximum(gmax_ref[0, 0],
                                 jnp.max(h4, axis=0, keepdims=True))


# ---------------------------------------------------------------------------
# Kernel B (writer): out[:, :c_glob, :] = gfeat (broadcast over points),
#                    out[:, c_glob:, :] = pointfeat (recomputed conv1+conv4)
# NCW orientation (channels on sublanes, points on lanes) -> output is written
# in its final layout; no transposes, no pointfeat HBM round-trip.
# ---------------------------------------------------------------------------
def writer_kernel(gfeat_ref, x_ref, w1_ref, b1_ref, w4_ref, b4_ref, out_ref,
                  *, c_glob):
    x = x_ref[0]                                  # (n_feat, tn) f32, native NCW
    n_feat, tn = x.shape

    # conv1 + bn1 + relu on the VPU: (sf,1)*(1,tn) broadcast FMAs.
    w1 = w1_ref[...]                              # (sf, n_feat)
    h1 = b1_ref[...]                              # (sf, 1), broadcasts below
    for c in range(n_feat):                       # static unroll
        h1 = h1 + w1[:, c:c + 1] * x[c:c + 1, :]
    h1 = jnp.maximum(h1, 0.0)                     # (sf, tn)

    # conv4 + bn12 + relu on the MXU (bf16 operands, f32 accumulate).
    h2 = jnp.dot(w4_ref[...], h1.astype(jnp.bfloat16),
                 preferred_element_type=jnp.float32)
    h2 = jnp.maximum(h2 + b4_ref[...], 0.0)       # (2sf, tn) = pointfeat

    out_ref[0, :c_glob, :] = jnp.broadcast_to(gfeat_ref[0], (c_glob, tn))
    out_ref[0, c_glob:, :] = h2


# ---------------------------------------------------------------------------
# Parameter construction + eval-mode BN folding (plain JAX glue).
# ---------------------------------------------------------------------------
def _layer_params(key, c_in, c_out):
    kw, kb, kg, kbe, km, kv = jax.random.split(key, 6)
    return dict(
        w=0.1 * jax.random.normal(kw, (c_out, c_in), jnp.float32),   # torch (Cout, Cin)
        b=0.1 * jax.random.normal(kb, (c_out,), jnp.float32),
        gamma=1.0 + 0.1 * jax.random.normal(kg, (c_out,), jnp.float32),
        beta=0.1 * jax.random.normal(kbe, (c_out,), jnp.float32),
        rmean=0.1 * jax.random.normal(km, (c_out,), jnp.float32),
        rvar=1.0 + 0.1 * jnp.abs(jax.random.normal(kv, (c_out,), jnp.float32)),
    )


def make_params(key, scale_factor, n_feat=3):
    sf = 8 * scale_factor
    dims = [(n_feat, sf), (sf, 2 * sf), (2 * sf, 4 * sf), (4 * sf, 8 * sf),
            (8 * sf, 4 * sf), (4 * sf, 2 * sf)]
    names = ["conv1", "conv4", "conv2", "conv3", "fc1", "fc2"]
    keys = jax.random.split(key, len(dims))
    return {n: _layer_params(k, ci, co) for n, k, (ci, co) in zip(names, keys, dims)}


def _fold_cl(p, w_dtype=jnp.float32):
    """Fold eval-mode BN; channels-last weight (Cin, Cout) + bias (1, Cout)."""
    s = p["gamma"] / jnp.sqrt(p["rvar"] + EPS)
    w = (p["w"] * s[:, None]).T.astype(w_dtype)
    b = (p["b"] * s + p["beta"] - p["rmean"] * s).reshape(1, -1).astype(jnp.float32)
    return w, b


def _fold_ncw(p, w_dtype=jnp.float32):
    """Fold eval-mode BN; NCW-orientation weight (Cout, Cin) + bias (Cout, 1)."""
    s = p["gamma"] / jnp.sqrt(p["rvar"] + EPS)
    w = (p["w"] * s[:, None]).astype(w_dtype)
    b = (p["b"] * s + p["beta"] - p["rmean"] * s).reshape(-1, 1).astype(jnp.float32)
    return w, b


def _vmem_budget():
    """~72% of per-core VMEM (leaves headroom for Mosaic internal scratch)."""
    try:
        cap = int(pltpu.get_tpu_info().vmem_capacity_bytes)
    except Exception:
        cap = 64 << 20            # conservative fallback (v7x per-core VMEM)
    return (cap * 18) // 25


# ---------------------------------------------------------------------------
# Wrapper: NCW in / NCW out.
# ---------------------------------------------------------------------------
def pointnetfeat_forward(x_ncw, params, *, tile_n=None):
    B, n_feat, N = x_ncw.shape
    sf = params["conv1"]["w"].shape[0]             # = 8 * scale_factor
    d2, d3, d4 = 2 * sf, 4 * sf, 8 * sf
    c_out = 2 * d2                                 # global (2sf) + pointfeat (2sf)

    budget = _vmem_budget()

    # ---- kernel A point tiling: biggest tile that fits VMEM (full N if possible)
    per_row_a = int(1.4 * (24 + 74 * sf))          # f32 acts + bf16 copies + x block
    fixed_a = 4 * 84 * sf * sf + (2 << 20)         # double-buffered bf16 weights + slack
    cap_a = min(max(128, (budget - fixed_a) // per_row_a), 8192)
    if tile_n is not None:
        cap_a = min(cap_a, max(int(tile_n), 128))
    n_tiles_a = _cdiv(N, cap_a)
    if B % 2 == 1 and n_tiles_a % 2 == 1 and N >= 256:
        n_tiles_a += 1                             # even count -> point axis splits across TCs
    tn_a = N if n_tiles_a == 1 else _round_up(_cdiv(N, n_tiles_a), 128)
    n_pad_a = tn_a * n_tiles_a
    n_outer = 2 if n_tiles_a % 2 == 0 else 1
    n_inner = n_tiles_a // n_outer

    # ---- kernel B point tiling (independent; full N almost always fits) ----
    per_row_b = int(1.4 * (24 + 46 * sf))
    cap_b = min(max(128, (budget - (2 << 20)) // per_row_b), 8192)
    if tile_n is not None:
        cap_b = min(cap_b, max(int(tile_n), 128))
    if N <= cap_b:
        tn_b, n_tiles_b = N, 1
    else:
        n_tiles_b = _cdiv(N, cap_b)
        tn_b = _round_up(_cdiv(N, n_tiles_b), 128)
    n_pad_b = tn_b * n_tiles_b

    # ---- data prep (tiny): both layouts of x, padded as needed ----
    x32 = x_ncw.astype(jnp.float32)
    x_a = x32 if n_pad_a == N else jnp.pad(x32, ((0, 0), (0, 0), (0, n_pad_a - N)))
    x_cl = jnp.transpose(x_a, (0, 2, 1))           # (B, n_pad_a, n_feat) channels-last
    x_b = x32 if n_pad_b == N else jnp.pad(x32, ((0, 0), (0, 0), (0, n_pad_b - N)))

    # ---- folded (eval-mode) BN weights ----
    w1, b1 = _fold_cl(params["conv1"])                        # VPU path, f32
    w4, b4 = _fold_cl(params["conv4"], jnp.bfloat16)
    w2, b2 = _fold_cl(params["conv2"], jnp.bfloat16)
    w3, b3 = _fold_cl(params["conv3"], jnp.bfloat16)
    w1r, b1r = _fold_ncw(params["conv1"])                     # writer kernel, f32
    w4r, b4r = _fold_ncw(params["conv4"], jnp.bfloat16)

    # ---- kernel A: conv1..conv3 + running channel max -> gmax ----
    def ca(a):
        nd = a.ndim
        return pl.BlockSpec(a.shape, lambda b, o, i: (0,) * nd)

    gmax = pl.pallas_call(
        functools.partial(encoder_kernel, n_valid=N, n_feat=n_feat,
                          n_inner=n_inner),
        out_shape=jax.ShapeDtypeStruct((B, n_outer, 1, d4), jnp.float32),
        grid=(B, n_outer, n_inner),
        in_specs=[pl.BlockSpec((1, tn_a, n_feat),
                               lambda b, o, i: (b, o * n_inner + i, 0)),
                  ca(w1), ca(b1), ca(w4), ca(b4),
                  ca(w2), ca(b2), ca(w3), ca(b3)],
        out_specs=pl.BlockSpec((1, 1, 1, d4), lambda b, o, i: (b, o, 0, 0)),
        compiler_params=pltpu.CompilerParams(
            dimension_semantics=("parallel", "parallel", "arbitrary"),
            vmem_limit_bytes=budget),
    )(x_cl, w1, b1, w4, b4, w2, b2, w3, b3)

    # ---- fc1/fc2 (M=1 per batch element): one tiny batched matmul in XLA ----
    wf1, bf1 = _fold_cl(params["fc1"])
    wf2, bf2 = _fold_cl(params["fc2"])
    g = jnp.max(gmax[:, :, 0, :], axis=1)                     # (B, 8*sf)
    f1 = jnp.maximum(jnp.dot(g, wf1) + bf1, 0.0)              # (B, 4*sf)
    gfeat = jnp.maximum(jnp.dot(f1, wf2) + bf2, 0.0)          # (B, 2*sf)
    gfeat = gfeat.reshape(B, d2, 1)

    # ---- kernel B: write the final NCW output (gfeat broadcast + pointfeat) ----
    def cb(a):
        nd = a.ndim
        return pl.BlockSpec(a.shape, lambda b, n: (0,) * nd)

    out = pl.pallas_call(
        functools.partial(writer_kernel, c_glob=d2),
        out_shape=jax.ShapeDtypeStruct((B, c_out, n_pad_b), jnp.float32),
        grid=(B, n_tiles_b),
        in_specs=[pl.BlockSpec((1, d2, 1), lambda b, n: (b, 0, 0)),
                  pl.BlockSpec((1, n_feat, tn_b), lambda b, n: (b, 0, n)),
                  cb(w1r), cb(b1r), cb(w4r), cb(b4r)],
        out_specs=pl.BlockSpec((1, c_out, tn_b), lambda b, n: (b, 0, n)),
        compiler_params=pltpu.CompilerParams(
            dimension_semantics=("parallel", "parallel"),
            vmem_limit_bytes=budget),
    )(gfeat, x_b, w1r, b1r, w4r, b4r)

    # Already NCW; only slice if the point axis had to be padded for tiling.
    return out if n_pad_b == N else out[:, :, :N]


# ---------------------------------------------------------------------------
# Pure-JAX reference (same eval-mode BN semantics, full f32) for a sanity check.
# ---------------------------------------------------------------------------
def _bn_ncw(y, p):
    s = p["gamma"] / jnp.sqrt(p["rvar"] + EPS)
    return y * s[None, :, None] + (p["beta"] - p["rmean"] * s)[None, :, None]


def _bn_nc(y, p):
    s = p["gamma"] / jnp.sqrt(p["rvar"] + EPS)
    return y * s[None, :] + (p["beta"] - p["rmean"] * s)[None, :]


def reference_forward(x, params):
    relu = lambda v: jnp.maximum(v, 0.0)
    conv = lambda h, p: jnp.einsum("oi,bin->bon", p["w"], h) + p["b"][None, :, None]
    n_pts = x.shape[2]
    h = relu(_bn_ncw(conv(x, params["conv1"]), params["conv1"]))
    h = relu(_bn_ncw(conv(h, params["conv4"]), params["conv4"]))
    pointfeat = h
    h = relu(_bn_ncw(conv(h, params["conv2"]), params["conv2"]))
    h = relu(_bn_ncw(conv(h, params["conv3"]), params["conv3"]))
    g = jnp.max(h, axis=2)                                       # (B, 8*sf)
    g = relu(_bn_nc(g @ params["fc1"]["w"].T + params["fc1"]["b"], params["fc1"]))
    g = relu(_bn_nc(g @ params["fc2"]["w"].T + params["fc2"]["b"], params["fc2"]))
    g = jnp.repeat(g[:, :, None], n_pts, axis=2)                 # (B, 2*sf, N)
    return jnp.concatenate([g, pointfeat], axis=1)


if __name__ == "__main__":
    key = jax.random.PRNGKey(0)
    k_x, k_p = jax.random.split(key)

    scale_factor = 2              # internal scale = 16
    n_feat = 3
    B, N = 2, 16
    x = jax.random.normal(k_x, (B, n_feat, N), jnp.float32)      # NCW, like PyTorch
    params = make_params(k_p, scale_factor, n_feat)

    out = jax.block_until_ready(pointnetfeat_forward(x, params))

    ref = reference_forward(x, params)
    assert out.shape == (B, 4 * 8 * scale_factor, N), out.shape
    # bf16 MXU operands (f32 accumulate) -> slightly looser tolerance vs f32 ref.
    np.testing.assert_allclose(np.asarray(out), np.asarray(ref), rtol=5e-2, atol=5e-2)

    print("KERNEL_OK")
</pallas_src>

<mosaic_0001>
module attributes {stable_mosaic.version = 11 : i64} {
  func.func @encoder_kernel(%arg0: i32, %arg1: i32, %arg2: i32, %arg3: memref<1x16x3xf32, #tpu.memory_space<vmem>>, %arg4: memref<3x16xf32, #tpu.memory_space<vmem>>, %arg5: memref<1x16xf32, #tpu.memory_space<vmem>>, %arg6: memref<16x32xbf16, #tpu.memory_space<vmem>>, %arg7: memref<1x32xf32, #tpu.memory_space<vmem>>, %arg8: memref<32x64xbf16, #tpu.memory_space<vmem>>, %arg9: memref<1x64xf32, #tpu.memory_space<vmem>>, %arg10: memref<64x128xbf16, #tpu.memory_space<vmem>>, %arg11: memref<1x128xf32, #tpu.memory_space<vmem>>, %arg12: memref<1x1x1x128xf32, #tpu.memory_space<vmem>>) attributes {dimension_semantics = [#tpu.dimension_semantics<parallel>, #tpu.dimension_semantics<parallel>, #tpu.dimension_semantics<arbitrary>], iteration_bounds = array<i64: 2, 1, 1>, scalar_prefetch = 0 : i64, scratch_operands = 0 : i64, tpu.core_type = #tpu.core_type<tc>, window_params = [{transform_indices = @transform_0, window_bounds = array<i64: 1, 16, 3>}, {pipeline_mode = #tpu.pipeline_mode<synchronous>, transform_indices = @transform_1, window_bounds = array<i64: 3, 16>}, {pipeline_mode = #tpu.pipeline_mode<synchronous>, transform_indices = @transform_2, window_bounds = array<i64: 1, 16>}, {pipeline_mode = #tpu.pipeline_mode<synchronous>, transform_indices = @transform_3, window_bounds = array<i64: 16, 32>}, {pipeline_mode = #tpu.pipeline_mode<synchronous>, transform_indices = @transform_4, window_bounds = array<i64: 1, 32>}, {pipeline_mode = #tpu.pipeline_mode<synchronous>, transform_indices = @transform_5, window_bounds = array<i64: 32, 64>}, {pipeline_mode = #tpu.pipeline_mode<synchronous>, transform_indices = @transform_6, window_bounds = array<i64: 1, 64>}, {pipeline_mode = #tpu.pipeline_mode<synchronous>, transform_indices = @transform_7, window_bounds = array<i64: 64, 128>}, {pipeline_mode = #tpu.pipeline_mode<synchronous>, transform_indices = @transform_8, window_bounds = array<i64: 1, 128>}, {transform_indices = @transform_9, window_bounds = array<i64: 1, 1, 1, 128>}]} {
    %c0_i32 = arith.constant 0 : i32
    %0 = arith.cmpi eq, %arg2, %c0_i32 : i32
    %1 = arith.extui %0 : i1 to i32
    %c0_i32_0 = arith.constant 0 : i32
    %2 = arith.cmpi ne, %1, %c0_i32_0 : i32
    scf.if %2 {
      %cst_36 = arith.constant 0xFF800000 : f32
      %72 = vector.broadcast %cst_36 : f32 to vector<1x1x1x128xf32>
      %c0_37 = arith.constant 0 : index
      %c0_38 = arith.constant 0 : index
      %c0_39 = arith.constant 0 : index
      %c0_40 = arith.constant 0 : index
      %73 = vector.load %arg12[%c0_37, %c0_38, %c0_39, %c0_40] : memref<1x1x1x128xf32, #tpu.memory_space<vmem>>, vector<1x1x1x128xf32>
      tpu.vector_store %arg12[%c0_37, %c0_38, %c0_39, %c0_40], %72 {strides = array<i32>} : memref<1x1x1x128xf32, #tpu.memory_space<vmem>>, vector<1x1x1x128xf32>,
    } else {
    }
    %c0 = arith.constant 0 : index
    %c0_1 = arith.constant 0 : index
    %c0_2 = arith.constant 0 : index
    %3 = vector.load %arg3[%c0, %c0_1, %c0_2] : memref<1x16x3xf32, #tpu.memory_space<vmem>>, vector<1x16x3xf32>
    %4 = vector.shape_cast %3 : vector<1x16x3xf32> to vector<16x3xf32>
    %c0_3 = arith.constant 0 : index
    %c0_4 = arith.constant 0 : index
    %5 = vector.load %arg4[%c0_3, %c0_4] : memref<3x16xf32, #tpu.memory_space<vmem>>, vector<3x16xf32>
    %c0_5 = arith.constant 0 : index
    %c0_6 = arith.constant 0 : index
    %6 = vector.load %arg5[%c0_5, %c0_6] : memref<1x16xf32, #tpu.memory_space<vmem>>, vector<1x16xf32>
    %7 = vector.extract_strided_slice %4 {offsets = [0, 0], sizes = [16, 1], strides = [1, 1]} : vector<16x3xf32> to vector<16x1xf32>
    %8 = vector.extract_strided_slice %5 {offsets = [0, 0], sizes = [1, 16], strides = [1, 1]} : vector<3x16xf32> to vector<1x16xf32>
    %9 = vector.broadcast %7 : vector<16x1xf32> to vector<16x16xf32>
    %10 = vector.broadcast %8 : vector<1x16xf32> to vector<16x16xf32>
    %11 = arith.mulf %9, %10 : vector<16x16xf32>
    %12 = vector.broadcast %6 : vector<1x16xf32> to vector<16x16xf32>
    %13 = arith.addf %12, %11 : vector<16x16xf32>
    %14 = vector.extract_strided_slice %4 {offsets = [0, 1], sizes = [16, 1], strides = [1, 1]} : vector<16x3xf32> to vector<16x1xf32>
    %15 = vector.extract_strided_slice %5 {offsets = [1, 0], sizes = [1, 16], strides = [1, 1]} : vector<3x16xf32> to vector<1x16xf32>
    %16 = vector.broadcast %14 : vector<16x1xf32> to vector<16x16xf32>
    %17 = vector.broadcast %15 : vector<1x16xf32> to vector<16x16xf32>
    %18 = arith.mulf %16, %17 : vector<16x16xf32>
    %19 = arith.addf %13, %18 : vector<16x16xf32>
    %20 = vector.extract_strided_slice %4 {offsets = [0, 2], sizes = [16, 1], strides = [1, 1]} : vector<16x3xf32> to vector<16x1xf32>
    %21 = vector.extract_strided_slice %5 {offsets = [2, 0], sizes = [1, 16], strides = [1, 1]} : vector<3x16xf32> to vector<1x16xf32>
    %22 = vector.broadcast %20 : vector<16x1xf32> to vector<16x16xf32>
    %23 = vector.broadcast %21 : vector<1x16xf32> to vector<16x16xf32>
    %24 = arith.mulf %22, %23 : vector<16x16xf32>
    %25 = arith.addf %19, %24 : vector<16x16xf32>
    %cst = arith.constant 0.000000e+00 : f32
    %26 = vector.broadcast %cst : f32 to vector<16x16xf32>
    %27 = arith.maximumf %25, %26 : vector<16x16xf32>
    %28 = arith.truncf %27 : vector<16x16xf32> to vector<16x16xbf16>
    %c0_7 = arith.constant 0 : index
    %c0_8 = arith.constant 0 : index
    %29 = vector.load %arg6[%c0_7, %c0_8] : memref<16x32xbf16, #tpu.memory_space<vmem>>, vector<16x32xbf16>
    %cst_9 = arith.constant dense<0.000000e+00> : vector<16x32xf32>
    %30 = tpu.matmul %28, %29, %cst_9 {dimension_numbers = #tpu.dot_dimension_numbers<[1], [0], [0], [1], [0, 0, 1, 1], [], []>} : vector<16x16xbf16>, vector<16x32xbf16>, vector<16x32xf32> -> vector<16x32xf32>
    %c0_10 = arith.constant 0 : index
    %c0_11 = arith.constant 0 : index
    %31 = vector.load %arg7[%c0_10, %c0_11] : memref<1x32xf32, #tpu.memory_space<vmem>>, vector<1x32xf32>
    %32 = vector.broadcast %31 : vector<1x32xf32> to vector<16x32xf32>
    %33 = arith.addf %30, %32 : vector<16x32xf32>
    %cst_12 = arith.constant 0.000000e+00 : f32
    %34 = vector.broadcast %cst_12 : f32 to vector<16x32xf32>
    %35 = arith.maximumf %33, %34 : vector<16x32xf32>
    %36 = arith.truncf %35 : vector<16x32xf32> to vector<16x32xbf16>
    %c0_13 = arith.constant 0 : index
    %c0_14 = arith.constant 0 : index
    %37 = vector.load %arg8[%c0_13, %c0_14] : memref<32x64xbf16, #tpu.memory_space<vmem>>, vector<32x64xbf16>
    %cst_15 = arith.constant dense<0.000000e+00> : vector<16x64xf32>
    %38 = tpu.matmul %36, %37, %cst_15 {dimension_numbers = #tpu.dot_dimension_numbers<[1], [0], [0], [1], [0, 0, 1, 1], [], []>} : vector<16x32xbf16>, vector<32x64xbf16>, vector<16x64xf32> -> vector<16x64xf32>
    %c0_16 = arith.constant 0 : index
    %c0_17 = arith.constant 0 : index
    %39 = vector.load %arg9[%c0_16, %c0_17] : memref<1x64xf32, #tpu.memory_space<vmem>>, vector<1x64xf32>
    %40 = vector.broadcast %39 : vector<1x64xf32> to vector<16x64xf32>
    %41 = arith.addf %38, %40 : vector<16x64xf32>
    %cst_18 = arith.constant 0.000000e+00 : f32
    %42 = vector.broadcast %cst_18 : f32 to vector<16x64xf32>
    %43 = arith.maximumf %41, %42 : vector<16x64xf32>
    %44 = arith.truncf %43 : vector<16x64xf32> to vector<16x64xbf16>
    %c0_19 = arith.constant 0 : index
    %c0_20 = arith.constant 0 : index
    %45 = vector.load %arg10[%c0_19, %c0_20] : memref<64x128xbf16, #tpu.memory_space<vmem>>, vector<64x128xbf16>
    %cst_21 = arith.constant dense<0.000000e+00> : vector<16x128xf32>
    %46 = tpu.matmul %44, %45, %cst_21 {dimension_numbers = #tpu.dot_dimension_numbers<[1], [0], [0], [1], [0, 0, 1, 1], [], []>} : vector<16x64xbf16>, vector<64x128xbf16>, vector<16x128xf32> -> vector<16x128xf32>
    %c0_22 = arith.constant 0 : index
    %c0_23 = arith.constant 0 : index
    %47 = vector.load %arg11[%c0_22, %c0_23] : memref<1x128xf32, #tpu.memory_space<vmem>>, vector<1x128xf32>
    %48 = vector.broadcast %47 : vector<1x128xf32> to vector<16x128xf32>
    %49 = arith.addf %46, %48 : vector<16x128xf32>
    %cst_24 = arith.constant 0.000000e+00 : f32
    %50 = vector.broadcast %cst_24 : f32 to vector<16x128xf32>
    %51 = arith.maximumf %49, %50 : vector<16x128xf32>
    %c1_i32 = arith.constant 1 : i32
    %52 = arith.muli %arg1, %c1_i32 : i32
    %53 = arith.addi %52, %arg2 : i32
    %c16_i32 = arith.constant 16 : i32
    %54 = arith.muli %53, %c16_i32 : i32
    %55 = tpu.iota {dimensions = array<i32: 0>} : vector<16x1xi32>
    %56 = vector.broadcast %54 : i32 to vector<16x1xi32>
    %57 = arith.addi %56, %55 : vector<16x1xi32>
    %c16_i32_25 = arith.constant 16 : i32
    %58 = vector.broadcast %c16_i32_25 : i32 to vector<16x1xi32>
    %59 = arith.cmpi slt, %57, %58 : vector<16x1xi32>
    %cst_26 = arith.constant 0xFF800000 : f32
    %60 = vector.shape_cast %59 : vector<16x1xi1> to vector<16x1xi1>
    %61 = vector.broadcast %60 : vector<16x1xi1> to vector<16x128xi1>
    %62 = vector.broadcast %cst_26 : f32 to vector<16x128xf32>
    %63 = arith.select %61, %51, %62 : vector<16x128xi1>, vector<16x128xf32>
    %c0_27 = arith.constant 0 : index
    %c0_28 = arith.constant 0 : index
    %c0_29 = arith.constant 0 : index
    %c0_30 = arith.constant 0 : index
    %64 = vector.load %arg12[%c0_27, %c0_28, %c0_29, %c0_30] : memref<1x1x1x128xf32, #tpu.memory_space<vmem>>, vector<1x1x1x128xf32>
    %65 = vector.shape_cast %64 : vector<1x1x1x128xf32> to vector<1x128xf32>
    %cst_31 = arith.constant dense<0xFF800000> : vector<128xf32>
    %66 = vector.multi_reduction <maximumf>, %63, %cst_31 [0] : vector<16x128xf32> to vector<128xf32>
    %67 = vector.shape_cast %66 : vector<128xf32> to vector<1x128xf32>
    %68 = arith.maximumf %65, %67 : vector<1x128xf32>
    %c0_32 = arith.constant 0 : index
    %c0_33 = arith.constant 0 : index
    %c0_34 = arith.constant 0 : index
    %c0_35 = arith.constant 0 : index
    %69 = vector.load %arg12[%c0_32, %c0_33, %c0_34, %c0_35] : memref<1x1x1x128xf32, #tpu.memory_space<vmem>>, vector<1x1x1x128xf32>
    %70 = vector.shape_cast %69 : vector<1x1x1x128xf32> to vector<1x128xf32>
    %71 = vector.shape_cast %68 : vector<1x128xf32> to vector<1x1x1x128xf32>
    tpu.vector_store %arg12[%c0_32, %c0_33, %c0_34, %c0_35], %71 {strides = array<i32>} : memref<1x1x1x128xf32, #tpu.memory_space<vmem>>, vector<1x1x1x128xf32>,
    return
  }
  func.func @transform_0(%arg0: i32, %arg1: i32, %arg2: i32) -> (i32, i32, i32) {
    %c1_i32 = arith.constant 1 : i32
    %0 = arith.muli %arg1, %c1_i32 : i32
    %1 = arith.addi %0, %arg2 : i32
    %c0_i32 = arith.constant 0 : i32
    %c0_i32_0 = arith.constant 0 : i32
    return %arg0, %1, %c0_i32 : i32, i32, i32
  }
  func.func @transform_1(%arg0: i32, %arg1: i32, %arg2: i32) -> (i32, i32) {
    %c0_i32 = arith.constant 0 : i32
    %c0_i32_0 = arith.constant 0 : i32
    %c0_i32_1 = arith.constant 0 : i32
    return %c0_i32, %c0_i32_0 : i32, i32
  }
  func.func @transform_2(%arg0: i32, %arg1: i32, %arg2: i32) -> (i32, i32) {
    %c0_i32 = arith.constant 0 : i32
    %c0_i32_0 = arith.constant 0 : i32
    %c0_i32_1 = arith.constant 0 : i32
    return %c0_i32, %c0_i32_0 : i32, i32
  }
  func.func @transform_3(%arg0: i32, %arg1: i32, %arg2: i32) -> (i32, i32) {
    %c0_i32 = arith.constant 0 : i32
    %c0_i32_0 = arith.constant 0 : i32
    %c0_i32_1 = arith.constant 0 : i32
    return %c0_i32, %c0_i32_0 : i32, i32
  }
  func.func @transform_4(%arg0: i32, %arg1: i32, %arg2: i32) -> (i32, i32) {
    %c0_i32 = arith.constant 0 : i32
    %c0_i32_0 = arith.constant 0 : i32
    %c0_i32_1 = arith.constant 0 : i32
    return %c0_i32, %c0_i32_0 : i32, i32
  }
  func.func @transform_5(%arg0: i32, %arg1: i32, %arg2: i32) -> (i32, i32) {
    %c0_i32 = arith.constant 0 : i32
    %c0_i32_0 = arith.constant 0 : i32
    %c0_i32_1 = arith.constant 0 : i32
    return %c0_i32, %c0_i32_0 : i32, i32
  }
  func.func @transform_6(%arg0: i32, %arg1: i32, %arg2: i32) -> (i32, i32) {
    %c0_i32 = arith.constant 0 : i32
    %c0_i32_0 = arith.constant 0 : i32
    %c0_i32_1 = arith.constant 0 : i32
    return %c0_i32, %c0_i32_0 : i32, i32
  }
  func.func @transform_7(%arg0: i32, %arg1: i32, %arg2: i32) -> (i32, i32) {
    %c0_i32 = arith.constant 0 : i32
    %c0_i32_0 = arith.constant 0 : i32
    %c0_i32_1 = arith.constant 0 : i32
    return %c0_i32, %c0_i32_0 : i32, i32
  }
  func.func @transform_8(%arg0: i32, %arg1: i32, %arg2: i32) -> (i32, i32) {
    %c0_i32 = arith.constant 0 : i32
    %c0_i32_0 = arith.constant 0 : i32
    %c0_i32_1 = arith.constant 0 : i32
    return %c0_i32, %c0_i32_0 : i32, i32
  }
  func.func @transform_9(%arg0: i32, %arg1: i32, %arg2: i32) -> (i32, i32, i32, i32) {
    %c0_i32 = arith.constant 0 : i32
    %c0_i32_0 = arith.constant 0 : i32
    %c0_i32_1 = arith.constant 0 : i32
    return %arg0, %arg1, %c0_i32, %c0_i32_0 : i32, i32, i32, i32
  }
}

</mosaic_0001>

<llo_original>
// kernel: tpu_custom_call.1
$region0: #{tpu_custom_call.1}
  #allocation0 [shape = 'u32[]', space=smem, size = 0x4, offset = 0x4, fixed_abs, tag = 'smem constant byte address 0x4 - core index']
  #allocation1 [shape = 'u32[144,128]{1,0:T(1,128)}', space=vmem, size = 0x12000, scoped, tag = 'internal scratch']
  %s0 = inlined_call_operand.vmem [shape: f32[2,16,3], index: 0, kind: input, shape index: {}]
  %s1 = inlined_call_operand.hbm [shape: f32[3,16], index: 1, kind: input, shape index: {}]
  %s2 = inlined_call_operand.vmem [shape: f32[1,16], index: 2, kind: input, shape index: {}]
  %s3 = inlined_call_operand.hbm [shape: bf16[16,32], index: 3, kind: input, shape index: {}]
  %s4 = inlined_call_operand.vmem [shape: f32[1,32], index: 4, kind: input, shape index: {}]
  %s5 = inlined_call_operand.vmem [shape: bf16[32,64], index: 5, kind: input, shape index: {}]
  %s6 = inlined_call_operand.hbm [shape: f32[1,64], index: 6, kind: input, shape index: {}]
  %s7 = inlined_call_operand.vmem [shape: bf16[64,128], index: 7, kind: input, shape index: {}]
  %s8 = inlined_call_operand.vmem [shape: f32[1,128], index: 8, kind: input, shape index: {}]
  %s9 = inlined_call_operand.hbm [shape: f32[2,1,1,128], index: 9, kind: output, shape index: {}]
  %s10 = sld [smem:[#allocation0]]
  $region85: #{tpu_custom_call.1} parent=0
    _
  %s12 = ssub.s32 1, %s10
  %s13 = scalar_select 0, %s12, %s10
  $region1: #{tpu_custom_call.1} parent=0
    #allocation2 [shape = 'u8[2048]{0}', space=vmem, size = 0x800, scoped, tag = 'input window, operand 1, single buffered']
    #allocation3 [shape = 's32[2]{0}', space=sflag, size = 0x8, scoped, tag = 'scoped memory for tpu_custom_call.1']
    #allocation4 [shape = 's32[2]{0}', space=sflag, size = 0x8, scoped, tag = 'scoped memory for tpu_custom_call.1']
    #allocation5 [shape = 'u8[4096]{0}', space=vmem, size = 0x1000, scoped, tag = 'input window, operand 3, single buffered']
    #allocation6 [shape = 's32[1]{0}', space=sflag, size = 0x4, scoped, tag = 'scoped memory for tpu_custom_call.1']
    #allocation7 [shape = 'u8[512]{0}', space=vmem, size = 0x400, scoped, tag = 'input window, operand 6, single buffered']
    #allocation8 [shape = 'u8[1024]{0}', space=vmem, size = 0x400, scoped, tag = 'output window, operand 0']
    %14 = vsyncpa [#allocation3], 0
    %15 = vsyncpa [#allocation6], 0
    %16 = vsyncpa [#allocation4], 0
    %s17 = scalar_lea.sflag [#allocation4], 1
    %18 = vsyncpa %s17, 0
    loop: start=0, step=1, limit=4
    $region2: #{tpu_custom_call.1} parent=1 // loop_pre_header
      _
    $region3: #{tpu_custom_call.1} parent=1 // loop_header
      %s20 = sphi 0, %s24
      %p21 = scmp.ge.s32.totalorder %s20, 4
      %s27 = sphi 0, %s46
      %s28 = sphi 0, %s42
      %s29 = sphi 0, %s38
      %s30 = sphi 0, %s27
      %s31 = sphi 0, %s28
      %s32 = sphi 0, %s29
      %s33 = sphi 0, %s30
      %s34 = sphi 0, %s31
      %s35 = sphi 0, %s32
      %s53 = sphi 0, %s55
      %s56 = sphi 0, %s53
      %s57 = sphi 0, %s56
      %s73 = sphi 0, %s57
      %s77 = sphi 0, %s77
      %s79 = sphi 0, %s77
      %s80 = sphi 0, %s79
      %s94 = sphi 0, %s80
      %s98 = sphi 0, %s98
      %s100 = sphi 0, %s98
      %s101 = sphi 0, %s100
      %s115 = sphi 0, %s101
      %s119 = sphi 0, %s119
      %s121 = sphi 0, %s119
      %s122 = sphi 0, %s121
      %s136 = sphi 0, %s122
      %s140 = sphi 0, %s140
      %s142 = sphi 0, %s140
      %s143 = sphi 0, %s142
      %s157 = sphi 0, %s143
      %s161 = sphi 0, %s161
      %s163 = sphi 0, %s161
      %s164 = sphi 0, %s163
      %s178 = sphi 0, %s164
      %s182 = sphi 0, %s182
      %s184 = sphi 0, %s182
      %s185 = sphi 0, %s184
      %s199 = sphi 0, %s185
      %s203 = sphi 0, %s203
      %s205 = sphi 0, %s203
      %s206 = sphi 0, %s205
      %s220 = sphi 0, %s206
      %s224 = sphi 0, %s224
      %s226 = sphi 0, %s224
      %s227 = sphi 0, %s226
      %s241 = sphi 0, %s227
      %s249 = sphi 0, %s251
      %s252 = sphi 0, %s249
      %s253 = sphi 0, %s252
      %s269 = sphi 0, %s253
    $region4: #{tpu_custom_call.1} parent=1 // loop_header_branch
      %23 = sbr.rel (%p21) target = $region8
    $region5: #{tpu_custom_call.1} parent=1 // loop_body
      %s25 = ssub.s32 %s20, 1
      %s26 = ssub.s32 %s20, 2
      %s36 = sadd.s32 1, %s29
      %p37 = scmp.ge.s32.totalorder %s36, 1
      %s38 = scalar_select %p37, 0, %s36
      %s39 = sadd.s32 1, %s28
      %s40 = scalar_select %p37, %s39, %s28
      %p41 = scmp.ge.s32.totalorder %s40, 1
      %s42 = scalar_select %p41, 0, %s40
      %s43 = sadd.s32 1, %s27
      %s44 = scalar_select %p41, %s43, %s27
      %p45 = scmp.ge.s32.totalorder %s44, 2
      %s46 = scalar_select %p45, 0, %s44
      %s47 = sadd.s32 %s28, %s29
      %s48 = sadd.s32 %s42, %s38
      %s49 = ssub.s32 %s27, %s46
      %s50 = ssub.s32 %s47, %s48
      %s51 = sor.u32 %s49, %s50
      %p52 = scmp.eq.s32.totalorder %s51, 0
      %s54 = sadd.s32 %s53, 1
      %s55 = scalar_select %p52, %s53, %s54
      %p58 = pneg %p52
      %p59 = scmp.eq.s32.totalorder %s20, 1
      %p60 = por %p58, %p59
      %p61 = scmp.ne.s32.totalorder %s53, %s56
      %p62 = scmp.eq.s32.totalorder %s20, 0
      %p63 = por %p61, %p62
      %p64 = scmp.ne.s32.totalorder %s53, %s56
      %p65 = scmp.eq.s32.totalorder %s25, 1
      %p66 = por %p64, %p65
      %p67 = scmp.ne.s32.totalorder %s56, %s57
      %p68 = scmp.eq.s32.totalorder %s25, 0
      %p69 = por %p67, %p68
      %p70 = scmp.ne.s32.totalorder %s56, %s57
      %p71 = scmp.eq.s32.totalorder %s26, 1
      %p72 = por %p70, %p71
      %p74 = scmp.ne.s32.totalorder %s57, %s73
      %p75 = scmp.eq.s32.totalorder %s26, 0
      %p76 = por %p74, %p75
      %s78 = sadd.s32 %s77, 1
      %p81 = scmp.eq.s32.totalorder %s20, 1
      %p82 = scmp.ne.s32.totalorder %s77, %s79
      %p83 = scmp.eq.s32.totalorder %s20, 0
      %p84 = por %p82, %p83
      %p85 = scmp.ne.s32.totalorder %s77, %s79
      %p86 = scmp.eq.s32.totalorder %s25, 1
      %p87 = por %p85, %p86
      %p88 = scmp.ne.s32.totalorder %s79, %s80
      %p89 = scmp.eq.s32.totalorder %s25, 0
      %p90 = por %p88, %p89
      %p91 = scmp.ne.s32.totalorder %s79, %s80
      %p92 = scmp.eq.s32.totalorder %s26, 1
      %p93 = por %p91, %p92
      %p95 = scmp.ne.s32.totalorder %s80, %s94
      %p96 = scmp.eq.s32.totalorder %s26, 0
      %p97 = por %p95, %p96
      %s99 = sadd.s32 %s98, 1
      %p102 = scmp.eq.s32.totalorder %s20, 1
      %p103 = scmp.ne.s32.totalorder %s98, %s100
      %p104 = scmp.eq.s32.totalorder %s20, 0
      %p105 = por %p103, %p104
      %p106 = scmp.ne.s32.totalorder %s98, %s100
      %p107 = scmp.eq.s32.totalorder %s25, 1
      %p108 = por %p106, %p107
      %p109 = scmp.ne.s32.totalorder %s100, %s101
      %p110 = scmp.eq.s32.totalorder %s25, 0
      %p111 = por %p109, %p110
      %p112 = scmp.ne.s32.totalorder %s100, %s101
      %p113 = scmp.eq.s32.totalorder %s26, 1
      %p114 = por %p112, %p113
      %p116 = scmp.ne.s32.totalorder %s101, %s115
      %p117 = scmp.eq.s32.totalorder %s26, 0
      %p118 = por %p116, %p117
      %s120 = sadd.s32 %s119, 1
      %p123 = scmp.eq.s32.totalorder %s20, 1
      %p124 = scmp.ne.s32.totalorder %s119, %s121
      %p125 = scmp.eq.s32.totalorder %s20, 0
      %p126 = por %p124, %p125
      %p127 = scmp.ne.s32.totalorder %s119, %s121
      %p128 = scmp.eq.s32.totalorder %s25, 1
      %p129 = por %p127, %p128
      %p130 = scmp.ne.s32.totalorder %s121, %s122
      %p131 = scmp.eq.s32.totalorder %s25, 0
      %p132 = por %p130, %p131
      %p133 = scmp.ne.s32.totalorder %s121, %s122
      %p134 = scmp.eq.s32.totalorder %s26, 1
      %p135 = por %p133, %p134
      %p137 = scmp.ne.s32.totalorder %s122, %s136
      %p138 = scmp.eq.s32.totalorder %s26, 0
      %p139 = por %p137, %p138
      %s141 = sadd.s32 %s140, 1
      %p144 = scmp.eq.s32.totalorder %s20, 1
      %p145 = scmp.ne.s32.totalorder %s140, %s142
      %p146 = scmp.eq.s32.totalorder %s20, 0
      %p147 = por %p145, %p146
      %p148 = scmp.ne.s32.totalorder %s140, %s142
      %p149 = scmp.eq.s32.totalorder %s25, 1
      %p150 = por %p148, %p149
      %p151 = scmp.ne.s32.totalorder %s142, %s143
      %p152 = scmp.eq.s32.totalorder %s25, 0
      %p153 = por %p151, %p152
      %p154 = scmp.ne.s32.totalorder %s142, %s143
      %p155 = scmp.eq.s32.totalorder %s26, 1
      %p156 = por %p154, %p155
      %p158 = scmp.ne.s32.totalorder %s143, %s157
      %p159 = scmp.eq.s32.totalorder %s26, 0
      %p160 = por %p158, %p159
      %s162 = sadd.s32 %s161, 1
      %p165 = scmp.eq.s32.totalorder %s20, 1
      %p166 = scmp.ne.s32.totalorder %s161, %s163
      %p167 = scmp.eq.s32.totalorder %s20, 0
      %p168 = por %p166, %p167
      %p169 = scmp.ne.s32.totalorder %s161, %s163
      %p170 = scmp.eq.s32.totalorder %s25, 1
      %p171 = por %p169, %p170
      %p172 = scmp.ne.s32.totalorder %s163, %s164
      %p173 = scmp.eq.s32.totalorder %s25, 0
      %p174 = por %p172, %p173
      %p175 = scmp.ne.s32.totalorder %s163, %s164
      %p176 = scmp.eq.s32.totalorder %s26, 1
      %p177 = por %p175, %p176
      %p179 = scmp.ne.s32.totalorder %s164, %s178
      %p180 = scmp.eq.s32.totalorder %s26, 0
      %p181 = por %p179, %p180
      %s183 = sadd.s32 %s182, 1
      %p186 = scmp.eq.s32.totalorder %s20, 1
      %p187 = scmp.ne.s32.totalorder %s182, %s184
      %p188 = scmp.eq.s32.totalorder %s20, 0
      %p189 = por %p187, %p188
      %p190 = scmp.ne.s32.totalorder %s182, %s184
      %p191 = scmp.eq.s32.totalorder %s25, 1
      %p192 = por %p190, %p191
      %p193 = scmp.ne.s32.totalorder %s184, %s185
      %p194 = scmp.eq.s32.totalorder %s25, 0
      %p195 = por %p193, %p194
      %p196 = scmp.ne.s32.totalorder %s184, %s185
      %p197 = scmp.eq.s32.totalorder %s26, 1
      %p198 = por %p196, %p197
      %p200 = scmp.ne.s32.totalorder %s185, %s199
      %p201 = scmp.eq.s32.totalorder %s26, 0
      %p202 = por %p200, %p201
      %s204 = sadd.s32 %s203, 1
      %p207 = scmp.eq.s32.totalorder %s20, 1
      %p208 = scmp.ne.s32.totalorder %s203, %s205
      %p209 = scmp.eq.s32.totalorder %s20, 0
      %p210 = por %p208, %p209
      %p211 = scmp.ne.s32.totalorder %s203, %s205
      %p212 = scmp.eq.s32.totalorder %s25, 1
      %p213 = por %p211, %p212
      %p214 = scmp.ne.s32.totalorder %s205, %s206
      %p215 = scmp.eq.s32.totalorder %s25, 0
      %p216 = por %p214, %p215
      %p217 = scmp.ne.s32.totalorder %s205, %s206
      %p218 = scmp.eq.s32.totalorder %s26, 1
      %p219 = por %p217, %p218
      %p221 = scmp.ne.s32.totalorder %s206, %s220
      %p222 = scmp.eq.s32.totalorder %s26, 0
      %p223 = por %p221, %p222
      %s225 = sadd.s32 %s224, 1
      %p228 = scmp.eq.s32.totalorder %s20, 1
      %p229 = scmp.ne.s32.totalorder %s224, %s226
      %p230 = scmp.eq.s32.totalorder %s20, 0
      %p231 = por %p229, %p230
      %p232 = scmp.ne.s32.totalorder %s224, %s226
      %p233 = scmp.eq.s32.totalorder %s25, 1
      %p234 = por %p232, %p233
      %p235 = scmp.ne.s32.totalorder %s226, %s227
      %p236 = scmp.eq.s32.totalorder %s25, 0
      %p237 = por %p235, %p236
      %p238 = scmp.ne.s32.totalorder %s226, %s227
      %p239 = scmp.eq.s32.totalorder %s26, 1
      %p240 = por %p238, %p239
      %p242 = scmp.ne.s32.totalorder %s227, %s241
      %p243 = scmp.eq.s32.totalorder %s26, 0
      %p244 = por %p242, %p243
      %s245 = ssub.s32 %s27, %s46
      %s246 = ssub.s32 %s28, %s42
      %s247 = sor.u32 %s245, %s246
      %p248 = scmp.eq.s32.totalorder %s247, 0
      %s250 = sadd.s32 %s249, 1
      %s251 = scalar_select %p248, %s249, %s250
      %p254 = pneg %p248
      %p255 = scmp.eq.s32.totalorder %s20, 1
      %p256 = por %p254, %p255
      %p257 = scmp.ne.s32.totalorder %s249, %s252
      %p258 = scmp.eq.s32.totalorder %s20, 0
      %p259 = por %p257, %p258
      %p260 = scmp.ne.s32.totalorder %s249, %s252
      %p261 = scmp.eq.s32.totalorder %s25, 1
      %p262 = por %p260, %p261
      %p263 = scmp.ne.s32.totalorder %s252, %s253
      %p264 = scmp.eq.s32.totalorder %s25, 0
      %p265 = por %p263, %p264
      %p266 = scmp.ne.s32.totalorder %s252, %s253
      %p267 = scmp.eq.s32.totalorder %s26, 1
      %p268 = por %p266, %p267
      %p270 = scmp.ne.s32.totalorder %s253, %s269
      %p271 = scmp.eq.s32.totalorder %s26, 0
      %p272 = por %p270, %p271
      %p273 = scmp.le.s32.totalorder 1, %s20
      %p274 = scmp.lt.s32.totalorder %s20, 3
      %p275 = pnand %p273, %p274
      %p276 = pneg %p275
      // Predicated region
      $region9: #{tpu_custom_call.1} parent=5 // pred_check
        _
      $region10: #{tpu_custom_call.1} parent=5 // pred_check_branch
        %278 = sbr.rel (%p275) target = $region12
      $region11: #{tpu_custom_call.1} parent=5 // pred_region
        %s279 = ssub.s32 %s20, 1
        // Predicated region
        $region13: #{tpu_custom_call.1} parent=11 // pred_check
          %p280 = pneg %p90
        $region14: #{tpu_custom_call.1} parent=11 // pred_check_branch
          %282 = sbr.rel (%p280) target = $region16
        $region15: #{tpu_custom_call.1} parent=11 // pred_region
          %s284 = ssub.s32 64, 64
          %285 = vsyncadd [#allocation3], %s284
          %s287 = sshll.u32 [#allocation2], 4
          %s288 = int_to_ptr.vmem [resolvable:$true] %s287
          %290 = dma.hbm_to_vmem [thread:$0]  %s1, 64, %s288, [#allocation3]
        $region16: #{tpu_custom_call.1} parent=11 // pred_fallthru
          _
        // Predicated region
        $region17: #{tpu_custom_call.1} parent=11 // pred_check
          %p291 = pneg %p111
        $region18: #{tpu_custom_call.1} parent=11 // pred_check_branch
          %293 = sbr.rel (%p291) target = $region20
        $region19: #{tpu_custom_call.1} parent=11 // pred_region
          _
        $region20: #{tpu_custom_call.1} parent=11 // pred_fallthru
          _
        // Predicated region
        $region21: #{tpu_custom_call.1} parent=11 // pred_check
          %p294 = pneg %p132
        $region22: #{tpu_custom_call.1} parent=11 // pred_check_branch
          %296 = sbr.rel (%p294) target = $region24
        $region23: #{tpu_custom_call.1} parent=11 // pred_region
          %s298 = ssub.s32 128, 128
          %299 = vsyncadd [#allocation6], %s298
          %s300 = sshll.u32 [#allocation5], 4
          %s301 = int_to_ptr.vmem [resolvable:$true] %s300
          %306 = dma.hbm_to_vmem [thread:$0]  %s3, 128, %s301, [#allocation6], 64, 64, 4
        $region24: #{tpu_custom_call.1} parent=11 // pred_fallthru
          _
        // Predicated region
        $region25: #{tpu_custom_call.1} parent=11 // pred_check
          %p307 = pneg %p153
        $region26: #{tpu_custom_call.1} parent=11 // pred_check_branch
          %309 = sbr.rel (%p307) target = $region28
        $region27: #{tpu_custom_call.1} parent=11 // pred_region
          _
        $region28: #{tpu_custom_call.1} parent=11 // pred_fallthru
          _
        // Predicated region
        $region29: #{tpu_custom_call.1} parent=11 // pred_check
          %p310 = pneg %p174
        $region30: #{tpu_custom_call.1} parent=11 // pred_check_branch
          %312 = sbr.rel (%p310) target = $region32
        $region31: #{tpu_custom_call.1} parent=11 // pred_region
          _
        $region32: #{tpu_custom_call.1} parent=11 // pred_fallthru
          _
        // Predicated region
        $region33: #{tpu_custom_call.1} parent=11 // pred_check
          %p313 = pneg %p195
        $region34: #{tpu_custom_call.1} parent=11 // pred_check_branch
          %315 = sbr.rel (%p313) target = $region36
        $region35: #{tpu_custom_call.1} parent=11 // pred_region
          %s317 = ssub.s32 16, 16
          %318 = vsyncadd [#allocation6], %s317
          %s320 = sshll.u32 [#allocation7], 4
          %s321 = int_to_ptr.vmem [resolvable:$true] %s320
          %323 = dma.hbm_to_vmem [thread:$0]  %s6, 16, %s321, [#allocation6]
        $region36: #{tpu_custom_call.1} parent=11 // pred_fallthru
          _
        // Predicated region
        $region37: #{tpu_custom_call.1} parent=11 // pred_check
          %p324 = pneg %p216
        $region38: #{tpu_custom_call.1} parent=11 // pred_check_branch
          %326 = sbr.rel (%p324) target = $region40
        $region39: #{tpu_custom_call.1} parent=11 // pred_region
          _
        $region40: #{tpu_custom_call.1} parent=11 // pred_fallthru
          _
        // Predicated region
        $region41: #{tpu_custom_call.1} parent=11 // pred_check
          %p327 = pneg %p237
        $region42: #{tpu_custom_call.1} parent=11 // pred_check_branch
          %329 = sbr.rel (%p327) target = $region44
        $region43: #{tpu_custom_call.1} parent=11 // pred_region
          _
        $region44: #{tpu_custom_call.1} parent=11 // pred_fallthru
          _
      $region12: #{tpu_custom_call.1} parent=5 // pred_fallthru
        _
      %p330 = scmp.lt.s32.totalorder %s20, 2
      // Predicated region
      $region45: #{tpu_custom_call.1} parent=5 // pred_check
        %p331 = pneg %p330
      $region46: #{tpu_custom_call.1} parent=5 // pred_check_branch
        %333 = sbr.rel (%p331) target = $region48
      $region47: #{tpu_custom_call.1} parent=5 // pred_region
        // Predicated region
        $region49: #{tpu_custom_call.1} parent=47 // pred_check
          %p334 = pneg %p63
        $region50: #{tpu_custom_call.1} parent=47 // pred_check_branch
          %336 = sbr.rel (%p334) target = $region52
        $region51: #{tpu_custom_call.1} parent=47 // pred_region
          %s337 = sadd.s32 %s28, %s29
          %s338 = smul.u32 2, %s337
          %p339 = scmp.lt.s32.totalorder %s27, 1
          %s340 = scalar_select %p339, %s27, 1
          %p341 = scmp.lt.s32.totalorder %s338, 1
          %s342 = scalar_select %p341, %s338, 1
          %s343 = smul.addr %s340, 2
          %s344 = sadd.s32 %s342, %s343
          %s345 = smul.addr %s344, 8
          %s346 = scalar_lea.vmem %s0, %s345
          %s347 = sadd.s32 %s28, %s29
          %s348 = smul.u32 2, %s347
        $region52: #{tpu_custom_call.1} parent=47 // pred_fallthru
          _
      $region48: #{tpu_custom_call.1} parent=5 // pred_fallthru
        _
      %p349 = scmp.le.s32.totalorder 1, %s20
      %p350 = scmp.lt.s32.totalorder %s20, 3
      %p351 = pnand %p349, %p350
      %p352 = pneg %p351
      // Predicated region
      $region53: #{tpu_custom_call.1} parent=5 // pred_check
        _
      $region54: #{tpu_custom_call.1} parent=5 // pred_check_branch
        %354 = sbr.rel (%p351) target = $region56
      $region55: #{tpu_custom_call.1} parent=5 // pred_region
        %s355 = ssub.s32 %s20, 1
        // Predicated region
        $region57: #{tpu_custom_call.1} parent=55 // pred_check
          %p356 = pneg %p90
        $region58: #{tpu_custom_call.1} parent=55 // pred_check_branch
          %358 = sbr.rel (%p356) target = $region60
        $region59: #{tpu_custom_call.1} parent=55 // pred_region
          %359 = dma.done [#allocation3], 64
        $region60: #{tpu_custom_call.1} parent=55 // pred_fallthru
          _
        // Predicated region
        $region61: #{tpu_custom_call.1} parent=55 // pred_check
          %p360 = pneg %p132
        $region62: #{tpu_custom_call.1} parent=55 // pred_check_branch
          %362 = sbr.rel (%p360) target = $region64
        $region63: #{tpu_custom_call.1} parent=55 // pred_region
          %363 = dma.done [#allocation6], 128
        $region64: #{tpu_custom_call.1} parent=55 // pred_fallthru
          _
        // Predicated region
        $region65: #{tpu_custom_call.1} parent=55 // pred_check
          %p364 = pneg %p195
        $region66: #{tpu_custom_call.1} parent=55 // pred_check_branch
          %366 = sbr.rel (%p364) target = $region68
        $region67: #{tpu_custom_call.1} parent=55 // pred_region
          %367 = dma.done [#allocation6], 16
        $region68: #{tpu_custom_call.1} parent=55 // pred_fallthru
          _
        %s368 = sadd.s32 %s31, %s32
        %s369 = smul.u32 2, %s368
        %p370 = scmp.lt.s32.totalorder %s30, 1
        %s371 = scalar_select %p370, %s30, 1
        %p372 = scmp.lt.s32.totalorder %s369, 1
        %s373 = scalar_select %p372, %s369, 1
        %s374 = smul.addr %s371, 2
        %s375 = sadd.s32 %s373, %s374
        %s376 = smul.addr %s375, 8
        %s377 = scalar_lea.vmem %s0, %s376
        %p378 = pneg %p69
        %p379 = pneg %p66
        %p380 = pneg %p90
        %p381 = pneg %p87
        %p382 = pneg %p111
        %p383 = pneg %p108
        %p384 = pneg %p132
        %p385 = pneg %p129
        %p386 = pneg %p153
        %p387 = pneg %p150
        %p388 = pneg %p174
        %p389 = pneg %p171
        %p390 = pneg %p195
        %p391 = pneg %p192
        %p392 = pneg %p216
        %p393 = pneg %p213
        %p394 = pneg %p237
        %p395 = pneg %p234
        %p396 = pneg %p265
        %p397 = pneg %p262
        %s398 = sand.u32 %s252, 1
        %s399 = scalar_lea.sflag [#allocation4], %s398
        %s400 = sand.u32 %s252, 1
        %s401 = scalar_lea.vmem [#allocation8], %s400
        %s402 = sadd.s32 %s31, %s32
        %s403 = smul.u32 2, %s402
        %p404 = scmp.lt.s32.totalorder %s30, 1
        %s405 = scalar_select %p404, %s30, 1
        %p406 = scmp.lt.s32.totalorder %s403, 1
        %s407 = scalar_select %p406, %s403, 1
        %s408 = smul.addr %s405, 2
        %s409 = sadd.s32 %s407, %s408
        %s410 = smul.addr %s409, 8
        %s411 = scalar_lea.vmem %s0, %s410
        %s412 = sadd.s32 %s31, %s32
        %s413 = smul.u32 2, %s412
        %p415 = scmp.eq.s32.totalorder %s32, 0
        // Predicated region
        $region69: #{tpu_custom_call.1} parent=55 // pred_check
          %p416 = pneg %p415
        $region70: #{tpu_custom_call.1} parent=55 // pred_check_branch
          %418 = sbr.rel (%p416) target = $region72
        $region71: #{tpu_custom_call.1} parent=55 // pred_region
          %419 = vst [vmem:[%s401] sm:$0x1] -inf
        $region72: #{tpu_custom_call.1} parent=55 // pred_fallthru
          _
        %v420 = vld [vmem:[%s411] sm:$0xff]
        %v421 = vld [vmem:[%s411 + $0x8] sm:$0xff]
        %v422 = vld [vmem:[#allocation2] sm:$0x7]
        %v423 = vld [vmem:[%s2] sm:$0x1]
        %425 = vset.pattern.permute.xlu0 0
        %426 = vperm.xlu0 %425, %v420
        %v427 = vpop.permute.xlu0 %426
        %430 = vset.pattern.permute.xlu0 0
        %431 = vperm.xlu0 %430, %v421
        %v432 = vpop.permute.xlu0 %431
        %v434 = vlaneseq
        %v435 = vshrl.u32 %v434, 7
        %v436 = vsub.s32 0, %v435
        %v437 = vrot.slane %v422, %v436
        %v438 = vmul.f32 %v427, %v437
        %v439 = vmul.f32 %v432, %v437
        %v441 = vlaneseq
        %v442 = vshrl.u32 %v441, 7
        %v443 = vsub.s32 0, %v442
        %v444 = vrot.slane %v423, %v443
        %v446 = vadd.f32 %v444, %v438
        %v447 = vadd.f32 %v444, %v439
        %448 = vset.pattern.permute.xlu0 1
        %449 = vperm.xlu0 %448, %v420
        %v450 = vpop.permute.xlu0 %449
        %452 = vset.pattern.permute.xlu0 1
        %453 = vperm.xlu0 %452, %v421
        %v454 = vpop.permute.xlu0 %453
        %v456 = vlaneseq
        %v457 = vshrl.u32 %v456, 7
        %v458 = vsub.s32 1, %v457
        %v459 = vrot.slane %v422, %v458
        %v460 = vmul.f32 %v450, %v459
        %v461 = vmul.f32 %v454, %v459
        %v462 = vadd.f32 %v446, %v460
        %v463 = vadd.f32 %v447, %v461
        %464 = vset.pattern.permute.xlu0 2
        %465 = vperm.xlu0 %464, %v420
        %v466 = vpop.permute.xlu0 %465
        %468 = vset.pattern.permute.xlu0 2
        %469 = vperm.xlu0 %468, %v421
        %v470 = vpop.permute.xlu0 %469
        %v472 = vlaneseq
        %v473 = vshrl.u32 %v472, 7
        %v474 = vsub.s32 2, %v473
        %v475 = vrot.slane %v422, %v474
        %v476 = vmul.f32 %v466, %v475
        %v477 = vmul.f32 %v470, %v475
        %v478 = vadd.f32 %v462, %v476
        %v479 = vadd.f32 %v463, %v477
        %v480 = vmax.f32 %v478, 0.0
        %v481 = vmax.f32 %v479, 0.0
        %v482 = vpack.c.bf16 %v481, %v480
        %v483 = vld [vmem:[#allocation5] sm:$0xf]
        %v484 = vld [vmem:[#allocation5 + $0x4] sm:$0xf]
        %v485 = vld [vmem:[%s4] sm:$0x1]
        %v487 = vlaneseq
        %v488 = vshrl.u32 %v487, 7
        %v489 = vsub.s32 0, %v488
        %v490 = vrot.slane %v485, %v489
        %v494 = vunpack.c.l.b16 %v483
        %v495 = vunpack.c.l.b16 %v484
        %v496 = vpack.c.b16 %v495, %v494
        %vm498 = vcmask 130048
        %v500 = vsel %vm498, %v482, 0
        %502 = vmatprep.subr.bf16.mxu0 0
        %503 = vmatpush1.bf16.msra.mxu0 0
        %504 = vmatprep.subr.bf16.mxu0 0
        %505 = vmatpush1.bf16.msra.mxu0 0
        %506 = vmatprep.subr.bf16.mxu0 0
        %507 = vmatpush1.bf16.msra.mxu0 0
        %508 = vmatprep.subr.bf16.mxu0 0
        %509 = vmatpush1.bf16.msra.mxu0 0
        %510 = vmatprep.subr.bf16.mxu0 0
        %511 = vmatpush1.bf16.msra.mxu0 0
        %512 = vmatprep.subr.bf16.mxu0 0
        %513 = vmatpush1.bf16.msra.mxu0 0
        %514 = vmatprep.subr.bf16.mxu0 0
        %515 = vmatpush1.bf16.msra.mxu0 0
        %516 = vmatprep.subr.bf16.mxu0 0
        %517 = vmatpush1.bf16.msra.mxu0 %v496
        %518 = vmatprep.subr.bf16.mxu0 0
        %519 = vmatpush2.bf16.msra.mxu0 0
        %520 = vmatprep.subr.bf16.mxu0 0
        %521 = vmatpush2.bf16.msra.mxu0 0
        %522 = vmatprep.subr.bf16.mxu0 0
        %523 = vmatpush2.bf16.msra.mxu0 0
        %524 = vmatprep.subr.bf16.mxu0 0
        %525 = vmatpush2.bf16.msra.mxu0 0
        %526 = vmatprep.subr.bf16.mxu0 0
        %527 = vmatpush2.bf16.msra.mxu0 0
        %528 = vmatprep.subr.bf16.mxu0 0
        %529 = vmatpush2.bf16.msra.mxu0 0
        %530 = vmatprep.subr.bf16.mxu0 0
        %531 = vmatpush2.bf16.msra.mxu0 0
        %532 = vmatprep.subr.bf16.mxu0 0
        %533 = vmatpush2.bf16.msra.mxu0 0
        %534 = vmatprep.mubr.bf16.mxu0 0
        %535 = vmatmul.mubr.bf16.gmra.mxu0 %v500
        %v536 = vpop.f32.mrf.mxu0
        %v537 = vadd.f32 %v490, %v536
        %v538 = vpop.f32.mrf.mxu0
        %v539 = vpop.f32.mrf.mxu0
        %v540 = vadd.f32 %v490, %v539
        %v541 = vpop.f32.mrf.mxu0
        %542 = vdwg.mxu0
        %v543 = vmax.f32 %v537, 0.0
        %v544 = vmax.f32 %v540, 0.0
        %v545 = vpack.c.bf16 %v544, %v543
        %v546 = vld [vmem:[%s5] sm:$0xf]
        %v547 = vld [vmem:[%s5 + $0x4] sm:$0xf]
        %v548 = vld [vmem:[%s5 + $0x8] sm:$0xf]
        %v549 = vld [vmem:[%s5 + $0xc] sm:$0xf]
        %v550 = vld [vmem:[#allocation7] sm:$0x1]
        %v552 = vlaneseq
        %v553 = vshrl.u32 %v552, 7
        %v554 = vsub.s32 0, %v553
        %v555 = vrot.slane %v550, %v554
        %v561 = vunpack.c.l.b16 %v546
        %v562 = vunpack.c.l.b16 %v547
        %v563 = vunpack.c.l.b16 %v548
        %v564 = vunpack.c.l.b16 %v549
        %v565 = vpack.c.b16 %v562, %v561
        %v566 = vpack.c.b16 %v564, %v563
        %vm569 = vcmask 261120
        %v571 = vsel %vm569, %v545, 0
        %573 = vmatprep.subr.bf16.mxu0 0
        %574 = vmatpush1.bf16.msra.mxu0 0
        %575 = vmatprep.subr.bf16.mxu0 0
        %576 = vmatpush1.bf16.msra.mxu0 0
        %577 = vmatprep.subr.bf16.mxu0 0
        %578 = vmatpush1.bf16.msra.mxu0 0
        %579 = vmatprep.subr.bf16.mxu0 0
        %580 = vmatpush1.bf16.msra.mxu0 0
        %581 = vmatprep.subr.bf16.mxu0 0
        %582 = vmatpush1.bf16.msra.mxu0 0
        %583 = vmatprep.subr.bf16.mxu0 0
        %584 = vmatpush1.bf16.msra.mxu0 0
        %585 = vmatprep.subr.bf16.mxu0 0
        %586 = vmatpush1.bf16.msra.mxu0 %v566
        %587 = vmatprep.subr.bf16.mxu0 0
        %588 = vmatpush1.bf16.msra.mxu0 %v565
        %589 = vmatprep.subr.bf16.mxu0 0
        %590 = vmatpush2.bf16.msra.mxu0 0
        %591 = vmatprep.subr.bf16.mxu0 0
        %592 = vmatpush2.bf16.msra.mxu0 0
        %593 = vmatprep.subr.bf16.mxu0 0
        %594 = vmatpush2.bf16.msra.mxu0 0
        %595 = vmatprep.subr.bf16.mxu0 0
        %596 = vmatpush2.bf16.msra.mxu0 0
        %597 = vmatprep.subr.bf16.mxu0 0
        %598 = vmatpush2.bf16.msra.mxu0 0
        %599 = vmatprep.subr.bf16.mxu0 0
        %600 = vmatpush2.bf16.msra.mxu0 0
        %601 = vmatprep.subr.bf16.mxu0 0
        %602 = vmatpush2.bf16.msra.mxu0 0
        %603 = vmatprep.subr.bf16.mxu0 0
        %604 = vmatpush2.bf16.msra.mxu0 0
        %605 = vmatprep.mubr.bf16.mxu0 0
        %606 = vmatmul.mubr.bf16.gmra.mxu0 %v571
        %v607 = vpop.f32.mrf.mxu0
        %v608 = vadd.f32 %v555, %v607
        %v609 = vpop.f32.mrf.mxu0
        %v610 = vpop.f32.mrf.mxu0
        %v611 = vadd.f32 %v555, %v610
        %v612 = vpop.f32.mrf.mxu0
        %613 = vdwg.mxu0
        %v614 = vmax.f32 %v608, 0.0
        %v615 = vmax.f32 %v611, 0.0
        %v616 = vpack.c.bf16 %v615, %v614
        %v617 = vld [vmem:[%s7] sm:$0xf]
        %v618 = vld [vmem:[%s7 + $0x4] sm:$0xf]
        %v619 = vld [vmem:[%s7 + $0x8] sm:$0xf]
        %v620 = vld [vmem:[%s7 + $0xc] sm:$0xf]
        %v621 = vld [vmem:[%s7 + $0x10] sm:$0xf]
        %v622 = vld [vmem:[%s7 + $0x14] sm:$0xf]
        %v623 = vld [vmem:[%s7 + $0x18] sm:$0xf]
        %v624 = vld [vmem:[%s7 + $0x1c] sm:$0xf]
        %v625 = vld [vmem:[%s8] sm:$0x1]
        %v627 = vlaneseq
        %v628 = vshrl.u32 %v627, 7
        %v629 = vsub.s32 0, %v628
        %v630 = vrot.slane %v625, %v629
        %v640 = vunpack.c.l.b16 %v617
        %v641 = vunpack.c.l.b16 %v618
        %v642 = vunpack.c.l.b16 %v619
        %v643 = vunpack.c.l.b16 %v620
        %v644 = vunpack.c.l.b16 %v621
        %v645 = vunpack.c.l.b16 %v622
        %v646 = vunpack.c.l.b16 %v623
        %v647 = vunpack.c.l.b16 %v624
        %v648 = vpack.c.b16 %v641, %v640
        %v649 = vpack.c.b16 %v643, %v642
        %v650 = vpack.c.b16 %v645, %v644
        %v651 = vpack.c.b16 %v647, %v646
        %vm656 = vcmask 523264
        %v658 = vsel %vm656, %v616, 0
        %660 = vmatprep.subr.bf16.mxu0 0
        %661 = vmatpush1.bf16.msra.mxu0 0
        %662 = vmatprep.subr.bf16.mxu0 0
        %663 = vmatpush1.bf16.msra.mxu0 0
        %664 = vmatprep.subr.bf16.mxu0 0
        %665 = vmatpush1.bf16.msra.mxu0 0
        %666 = vmatprep.subr.bf16.mxu0 0
        %667 = vmatpush1.bf16.msra.mxu0 0
        %668 = vmatprep.subr.bf16.mxu0 0
        %669 = vmatpush1.bf16.msra.mxu0 %v651
        %670 = vmatprep.subr.bf16.mxu0 0
        %671 = vmatpush1.bf16.msra.mxu0 %v650
        %672 = vmatprep.subr.bf16.mxu0 0
        %673 = vmatpush1.bf16.msra.mxu0 %v649
        %674 = vmatprep.subr.bf16.mxu0 0
        %675 = vmatpush1.bf16.msra.mxu0 %v648
        %676 = vmatprep.subr.bf16.mxu0 0
        %677 = vmatpush2.bf16.msra.mxu0 0
        %678 = vmatprep.subr.bf16.mxu0 0
        %679 = vmatpush2.bf16.msra.mxu0 0
        %680 = vmatprep.subr.bf16.mxu0 0
        %681 = vmatpush2.bf16.msra.mxu0 0
        %682 = vmatprep.subr.bf16.mxu0 0
        %683 = vmatpush2.bf16.msra.mxu0 0
        %684 = vmatprep.subr.bf16.mxu0 0
        %685 = vmatpush2.bf16.msra.mxu0 0
        %686 = vmatprep.subr.bf16.mxu0 0
        %687 = vmatpush2.bf16.msra.mxu0 0
        %688 = vmatprep.subr.bf16.mxu0 0
        %689 = vmatpush2.bf16.msra.mxu0 0
        %690 = vmatprep.subr.bf16.mxu0 0
        %691 = vmatpush2.bf16.msra.mxu0 0
        %692 = vmatprep.mubr.bf16.mxu0 0
        %693 = vmatmul.mubr.bf16.gmra.mxu0 %v658
        %v694 = vpop.f32.mrf.mxu0
        %v695 = vadd.f32 %v630, %v694
        %v696 = vpop.f32.mrf.mxu0
        %v697 = vpop.f32.mrf.mxu0
        %v698 = vadd.f32 %v630, %v697
        %v699 = vpop.f32.mrf.mxu0
        %700 = vdwg.mxu0
        %v701 = vmax.f32 %v695, 0.0
        %v702 = vmax.f32 %v698, 0.0
        %s703 = sadd.s32 %s31, %s32
        %s704 = smul.u32 %s703, 16
        %v705 = vlaneseq
        %v706 = vshrl.u32 %v705, 7
        %v707 = vadd.s32 %v706, 8
        %v708 = vstv %s704
        %v709 = vadd.s32 %v708, %v706
        %v710 = vadd.s32 %v708, %v707
        %vm711 = vcmp.lt.s32.totalorder %v709, 16
        %vm712 = vcmp.lt.s32.totalorder %v710, 16
        %v713 = vsel %vm711, 1, 0
        %v714 = vsel %vm712, 1, 0
        %vm715 = vcmp.eq.s32.totalorder %v713, 1
        %vm716 = vcmp.eq.s32.totalorder %v714, 1
        %v717 = vsel %vm715, %v701, -inf
        %v718 = vsel %vm716, %v702, -inf
        %v719 = vld [vmem:[%s401] sm:$0x1]
        %v720 = vmax.f32 %v717, %v718
        %v721 = vrot.slane %v720, 4
        %v722 = vmax.f32 %v720, %v721
        %v723 = vrot.slane %v722, 2
        %v724 = vmax.f32 %v722, %v723
        %v725 = vrot.slane %v724, 1
        %v726 = vmax.f32 %v724, %v725
        %v727 = vmax.f32 %v719, %v726
        %728 = vst [vmem:[%s401] sm:$0x1] %v727
        %s729 = sand.u32 %s252, 1
        %s730 = scalar_lea.sflag [#allocation4], %s729
        %s731 = sand.u32 %s252, 1
        %s732 = scalar_lea.vmem [#allocation8], %s731
        // Predicated region
        $region73: #{tpu_custom_call.1} parent=55 // pred_check
          %p733 = pneg %p262
        $region74: #{tpu_custom_call.1} parent=55 // pred_check_branch
          %735 = sbr.rel (%p733) target = $region76
        $region75: #{tpu_custom_call.1} parent=55 // pred_region
          %s737 = ssub.s32 16, 16
          %738 = vsyncadd %s730, %s737
          %s739 = sadd.s32 %s31, %s30
          %s740 = smul.addr %s739, 16
          %s741 = scalar_lea.hbm %s9, %s740
          %s743 = sshll.u32 %s732, 4
          %s744 = int_to_ptr.vmem [resolvable:$true] %s743
          %746 = dma.vmem_to_hbm [thread:$0]  %s744, 16, %s741, %s730
        $region76: #{tpu_custom_call.1} parent=55 // pred_fallthru
          _
      $region56: #{tpu_custom_call.1} parent=5 // pred_fallthru
        _
      %p747 = scmp.le.s32.totalorder 2, %s20
      // Predicated region
      $region77: #{tpu_custom_call.1} parent=5 // pred_check
        %p748 = pneg %p747
      $region78: #{tpu_custom_call.1} parent=5 // pred_check_branch
        %750 = sbr.rel (%p748) target = $region80
      $region79: #{tpu_custom_call.1} parent=5 // pred_region
        %s751 = ssub.s32 %s20, 2
        // Predicated region
        $region81: #{tpu_custom_call.1} parent=79 // pred_check
          %p752 = pneg %p268
        $region82: #{tpu_custom_call.1} parent=79 // pred_check_branch
          %754 = sbr.rel (%p752) target = $region84
        $region83: #{tpu_custom_call.1} parent=79 // pred_region
          %s755 = sand.u32 %s253, 1
          %s756 = scalar_lea.sflag [#allocation4], %s755
          %s757 = sand.u32 %s253, 1
          %s758 = scalar_lea.vmem [#allocation8], %s757
          %759 = dma.done %s756, 16
        $region84: #{tpu_custom_call.1} parent=79 // pred_fallthru
          _
      $region80: #{tpu_custom_call.1} parent=5 // pred_fallthru
        _
    $region6: #{tpu_custom_call.1} parent=1 // loop_footer
      %s24 = sadd.s32 1, %s20
    $region7: #{tpu_custom_call.1} parent=1 // loop_footer_branch
      %19 = sbr.rel target = $region3
    $region8: #{tpu_custom_call.1} parent=1 // loop_exit
      _
    %760 = vsyncpa [#allocation3], 1
    %s761 = scalar_lea.sflag [#allocation3], 1
    %762 = vsyncpa %s761, 1
    %763 = vsyncpa [#allocation6], 1
    %764 = vsyncpa [#allocation4], 1
    %s765 = scalar_lea.sflag [#allocation4], 1
    %766 = vsyncpa %s765, 1

</llo_original>
